<compile_context>
chip_gen: v5e
topology: v5e:2x2
jax: 0.10.0
libtpu: 0.0.40
codegen_flags: <defaults>
</compile_context>

<pallas_src>
import functools

import jax
import jax.numpy as jnp
from jax.experimental import pallas as pl
from jax.experimental.pallas import tpu as pltpu

LANES = 128
SUBLANES = 8
BLOCK_ROWS = 512                      # (512, 128) f32 block = 256 KiB per grid step
BLOCK_ELEMS = BLOCK_ROWS * LANES


def _pnorm_accum_kernel(seg_ref, first_ref, x_ref, o_ref, *, p):
    """Accumulate sum(|x|^p) of the current block into the (8, 128) vector
    accumulator of the weight this block belongs to."""
    i = pl.program_id(0)

    # Zero this weight's accumulator on its first block.  The output block is
    # resident across the contiguous run of grid steps belonging to one weight,
    # so accumulation with `+=` is safe afterwards.
    @pl.when(first_ref[i] == 1)
    def _():
        o_ref[...] = jnp.zeros_like(o_ref)

    x = x_ref[...].astype(jnp.float32)
    if p == 2:
        contrib = x * x
    else:  # p == 1
        contrib = jnp.abs(x)

    # Pure-VPU accumulation: fold (BLOCK_ROWS, 128) into an (8, 128) vreg-shaped
    # accumulator; the expensive cross-lane/sublane reduce is paid once, in JAX.
    o_ref[...] += jnp.sum(
        contrib.reshape(BLOCK_ROWS // SUBLANES, SUBLANES, LANES), axis=0)


@functools.partial(jax.jit, static_argnums=0)
def _fused_weight_norms(p, *weights):
    """p-norm (p in {1, 2}) of every weight tensor with a single pallas_call."""
    num_w = len(weights)
    # Keep narrow dtypes (e.g. bf16) narrow in HBM; upcast to f32 in-kernel.
    store_dtype = jnp.result_type(*[w.dtype for w in weights])

    segs = []
    block_seg = []       # grid block -> weight index
    block_first = []     # 1 iff this grid block is the first block of its weight
    for wi, w in enumerate(weights):
        flat = jnp.ravel(w).astype(store_dtype)
        n = flat.shape[0]
        nblk = max(1, -(-n // BLOCK_ELEMS))            # ceil(n / BLOCK_ELEMS)
        pad = nblk * BLOCK_ELEMS - n
        if pad:
            flat = jnp.concatenate([flat, jnp.zeros((pad,), store_dtype)])
        segs.append(flat)
        block_seg.extend([wi] * nblk)
        block_first.extend([1] + [0] * (nblk - 1))

    x = jnp.concatenate(segs).reshape(-1, LANES)       # lane-dense slab
    total_blocks = len(block_seg)
    block_seg = jnp.asarray(block_seg, jnp.int32)
    block_first = jnp.asarray(block_first, jnp.int32)

    kernel = functools.partial(_pnorm_accum_kernel, p=p)

    out = pl.pallas_call(
        kernel,
        out_shape=jax.ShapeDtypeStruct((num_w * SUBLANES, LANES), jnp.float32),
        grid_spec=pltpu.PrefetchScalarGridSpec(
            num_scalar_prefetch=2,
            grid=(total_blocks,),
            in_specs=[
                pl.BlockSpec((BLOCK_ROWS, LANES), lambda i, seg, first: (i, 0)),
            ],
            out_specs=pl.BlockSpec((SUBLANES, LANES),
                                   lambda i, seg, first: (seg[i], 0)),
        ),
        compiler_params=pltpu.CompilerParams(
            dimension_semantics=("arbitrary",)),
    )(block_seg, block_first, x)

    per_weight = jnp.sum(out.reshape(num_w, SUBLANES * LANES), axis=-1)
    if p == 2:
        return jnp.sqrt(per_weight)
    return per_weight


def get_weight(named_params):
    """Mirror of Regularization.get_weight: keep params whose name has 'weight'."""
    return [(name, p) for name, p in named_params if "weight" in name]


def regularization_loss(weight_list, weight_decay, p=2):
    """Mirror of Regularization.regularization_loss."""
    if p not in (1, 2):
        # TODO(synk): general p-norm (p not in {1, 2}) not implemented; the
        # PyTorch module defaults to p=2.
        raise NotImplementedError("only p=1 and p=2 norms are supported")
    if not weight_list:
        return jnp.float32(0.0)
    norms = _fused_weight_norms(p, *[w for _name, w in weight_list])
    return jnp.float32(weight_decay) * jnp.sum(norms)


def regularization_forward(named_params, weight_decay, p=2):
    """Equivalent of Regularization.forward(model)."""
    weight_list = get_weight(named_params)
    return regularization_loss(weight_list, weight_decay, p=p)


if __name__ == "__main__":
    # Deterministic synthetic "model" parameters (a small conv net plus one
    # multi-block embedding weight to exercise the accumulator path):
    #   conv1.weight [4, 4, 3, 3], conv1.bias [4]
    #   bn1.weight   [4],          bn1.bias   [4]
    #   fc.weight    [32, 16],     fc.bias    [32]
    #   embed.weight [600, 128]   (> BLOCK_ELEMS -> spans 2 grid blocks)
    key = jax.random.PRNGKey(0)
    k1, k2, k3, k4, k5, k6, k7 = jax.random.split(key, 7)
    named_params = [
        ("conv1.weight", jax.random.normal(k1, (4, 4, 3, 3), jnp.float32) * 0.1),
        ("conv1.bias", jax.random.normal(k2, (4,), jnp.float32) * 0.1),
        ("bn1.weight", jax.random.normal(k3, (4,), jnp.float32) * 0.1 + 1.0),
        ("bn1.bias", jax.random.normal(k4, (4,), jnp.float32) * 0.1),
        ("fc.weight", jax.random.normal(k5, (32, 16), jnp.float32) * 0.1),
        ("fc.bias", jax.random.normal(k6, (32,), jnp.float32) * 0.1),
        ("embed.weight", jax.random.normal(k7, (600, 128), jnp.float32) * 0.05),
    ]

    weight_decay = 1e-3

    # p = 2 (module default).
    loss2 = regularization_forward(named_params, weight_decay, p=2)
    loss2 = jax.block_until_ready(loss2)
    ref2 = jnp.float32(0.0)
    for name, w in named_params:
        if "weight" in name:
            ref2 = ref2 + jnp.sqrt(jnp.sum(jnp.square(w.astype(jnp.float32))))
    ref2 = weight_decay * ref2
    assert jnp.allclose(loss2, ref2, rtol=1e-5, atol=1e-6), (loss2, ref2)

    # p = 1 (L1 path).
    loss1 = regularization_forward(named_params, weight_decay, p=1)
    loss1 = jax.block_until_ready(loss1)
    ref1 = jnp.float32(0.0)
    for name, w in named_params:
        if "weight" in name:
            ref1 = ref1 + jnp.sum(jnp.abs(w.astype(jnp.float32)))
    ref1 = weight_decay * ref1
    assert jnp.allclose(loss1, ref1, rtol=1e-5, atol=1e-6), (loss1, ref1)

    print("KERNEL_OK")
</pallas_src>

<mosaic_0001>
module attributes {stable_mosaic.version = 11 : i64} {
  func.func @_pnorm_accum_kernel(%arg0: i32, %arg1: memref<5xi32, #tpu.memory_space<smem>>, %arg2: memref<5xi32, #tpu.memory_space<smem>>, %arg3: memref<512x128xf32, #tpu.memory_space<vmem>>, %arg4: memref<8x128xf32, #tpu.memory_space<vmem>>) attributes {dimension_semantics = [#tpu.dimension_semantics<arbitrary>], iteration_bounds = array<i64: 5>, scalar_prefetch = 2 : i64, scratch_operands = 0 : i64, tpu.core_type = #tpu.core_type<tc>, window_params = [{transform_indices = @transform_0, window_bounds = array<i64: 512, 128>}, {transform_indices = @transform_1, window_bounds = array<i64: 8, 128>}]} {
    %0 = arith.index_cast %arg0 : i32 to index
    %1 = memref.load %arg2[%0] : memref<5xi32, #tpu.memory_space<smem>>
    %c1_i32 = arith.constant 1 : i32
    %2 = arith.cmpi eq, %1, %c1_i32 : i32
    %3 = arith.extui %2 : i1 to i32
    %c0_i32 = arith.constant 0 : i32
    %4 = arith.cmpi ne, %3, %c0_i32 : i32
    scf.if %4 {
      %cst_5 = arith.constant 0.000000e+00 : f32
      %12 = vector.broadcast %cst_5 : f32 to vector<8x128xf32>
      %c0_6 = arith.constant 0 : index
      %c0_7 = arith.constant 0 : index
      %13 = vector.load %arg4[%c0_6, %c0_7] : memref<8x128xf32, #tpu.memory_space<vmem>>, vector<8x128xf32>
      tpu.vector_store %arg4[%c0_6, %c0_7], %12 {strides = array<i32>} : memref<8x128xf32, #tpu.memory_space<vmem>>, vector<8x128xf32>,
    } else {
    }
    %c0 = arith.constant 0 : index
    %c0_0 = arith.constant 0 : index
    %5 = vector.load %arg3[%c0, %c0_0] : memref<512x128xf32, #tpu.memory_space<vmem>>, vector<512x128xf32>
    %6 = arith.mulf %5, %5 : vector<512x128xf32>
    %c0_1 = arith.constant 0 : index
    %c0_2 = arith.constant 0 : index
    %7 = vector.load %arg4[%c0_1, %c0_2] : memref<8x128xf32, #tpu.memory_space<vmem>>, vector<8x128xf32>
    %8 = vector.shape_cast %6 : vector<512x128xf32> to vector<64x8x128xf32>
    %cst = arith.constant dense<0.000000e+00> : vector<8x128xf32>
    %9 = vector.multi_reduction <add>, %8, %cst [0] : vector<64x8x128xf32> to vector<8x128xf32>
    %10 = arith.addf %7, %9 : vector<8x128xf32>
    %c0_3 = arith.constant 0 : index
    %c0_4 = arith.constant 0 : index
    %11 = vector.load %arg4[%c0_3, %c0_4] : memref<8x128xf32, #tpu.memory_space<vmem>>, vector<8x128xf32>
    tpu.vector_store %arg4[%c0_3, %c0_4], %10 {strides = array<i32>} : memref<8x128xf32, #tpu.memory_space<vmem>>, vector<8x128xf32>,
    return
  }
  func.func @transform_0(%arg0: i32, %arg1: memref<5xi32, #tpu.memory_space<smem>>, %arg2: memref<5xi32, #tpu.memory_space<smem>>) -> (i32, i32) {
    %c0_i32 = arith.constant 0 : i32
    %c0_i32_0 = arith.constant 0 : i32
    return %arg0, %c0_i32 : i32, i32
  }
  func.func @transform_1(%arg0: i32, %arg1: memref<5xi32, #tpu.memory_space<smem>>, %arg2: memref<5xi32, #tpu.memory_space<smem>>) -> (i32, i32) {
    %0 = arith.index_cast %arg0 : i32 to index
    %1 = memref.load %arg1[%0] : memref<5xi32, #tpu.memory_space<smem>>
    %c0_i32 = arith.constant 0 : i32
    %c0_i32_0 = arith.constant 0 : i32
    return %1, %c0_i32 : i32, i32
  }
}

</mosaic_0001>

<llo_original>
// kernel: _fused_weight_norms.1
$region0: #{_fused_weight_norms.1}
  #allocation0 [shape = 'u32[]', space=smem, size = 0x4, offset = 0x4, fixed_abs, tag = 'smem constant byte address 0x4 - core index']
  #allocation1 [shape = 'u32[72,128]{1,0:T(1,128)}', space=vmem, size = 0x9000, scoped, tag = 'internal scratch']
  #allocation2 [shape = 's32[1]{0}', space=sflag, size = 0x4, scoped, tag = 'scoped memory for _fused_weight_norms.1']
  #allocation3 [shape = 'u8[512]{0}', space=smem, size = 0x200, scoped, tag = 'prefetched SMEM operand 0']
  #allocation4 [shape = 'u8[512]{0}', space=smem, size = 0x200, scoped, tag = 'prefetched SMEM operand 1']
  %s0 = inlined_call_operand.vmem [shape: s32[5], index: 0, kind: input, shape index: {}]
  %s1 = inlined_call_operand.vmem [shape: s32[5], index: 1, kind: input, shape index: {}]
  %s2 = inlined_call_operand.vmem [shape: f32[2560,128], index: 2, kind: input, shape index: {}]
  %s3 = inlined_call_operand.vmem [shape: f32[32,128], index: 3, kind: output, shape index: {}]
  %s4 = sld [smem:[#allocation0]]
  $region41: #{_fused_weight_norms.1} parent=0
    _
  %s6 = ssub.s32 1, %s4
  %s7 = scalar_select 0, %s6, %s4
  %s9 = sshll.u32 %s0, 4
  %s10 = int_to_ptr.vmem [resolvable:$true] %s9
  %12 = dma.vmem_to_smem %s10, 16, [#allocation3], [#allocation2]
  %s14 = sshll.u32 %s1, 4
  %s15 = int_to_ptr.vmem [resolvable:$true] %s14
  %17 = dma.vmem_to_smem %s15, 16, [#allocation4], [#allocation2]
  %19 = dma.done [#allocation2], 32
  %20 = sfence
  loop: start=0, step=1, limit=7
  $region2: #{_fused_weight_norms.1} parent=0 // loop_pre_header
    _
  $region3: #{_fused_weight_norms.1} parent=0 // loop_header
    %s22 = sphi 0, %s26
    %p23 = scmp.ge.s32.totalorder %s22, 7
    %s32 = sphi 0, %s34
    %s35 = sphi 0, %s32
    %s36 = sphi 0, %s35
    %s52 = sphi 0, %s36
    %s60 = sphi 0, %s62
    %s63 = sphi 0, %s60
    %s64 = sphi 0, %s63
    %s80 = sphi 0, %s64
  $region4: #{_fused_weight_norms.1} parent=0 // loop_header_branch
    %25 = sbr.rel (%p23) target = $region8
  $region5: #{_fused_weight_norms.1} parent=0 // loop_body
    %s27 = ssub.s32 %s22, 1
    %s28 = ssub.s32 %s22, 2
    %s29 = sadd.s32 %s22, 1
    %s30 = ssub.s32 %s22, %s29
    %p31 = scmp.eq.s32.totalorder %s30, 0
    %s33 = sadd.s32 %s32, 1
    %s34 = scalar_select %p31, %s32, %s33
    %p37 = pneg %p31
    %p38 = scmp.eq.s32.totalorder %s22, 4
    %p39 = por %p37, %p38
    %p40 = scmp.ne.s32.totalorder %s32, %s35
    %p41 = scmp.eq.s32.totalorder %s22, 0
    %p42 = por %p40, %p41
    %p43 = scmp.ne.s32.totalorder %s32, %s35
    %p44 = scmp.eq.s32.totalorder %s27, 4
    %p45 = por %p43, %p44
    %p46 = scmp.ne.s32.totalorder %s35, %s36
    %p47 = scmp.eq.s32.totalorder %s27, 0
    %p48 = por %p46, %p47
    %p49 = scmp.ne.s32.totalorder %s35, %s36
    %p50 = scmp.eq.s32.totalorder %s28, 4
    %p51 = por %p49, %p50
    %p53 = scmp.ne.s32.totalorder %s36, %s52
    %p54 = scmp.eq.s32.totalorder %s28, 0
    %p55 = por %p53, %p54
    %s56 = sld [smem:[#allocation3 + %s22]]
    %s57 = sld [smem:[#allocation3 + %s29]]
    %s58 = ssub.s32 %s56, %s57
    %p59 = scmp.eq.s32.totalorder %s58, 0
    %s61 = sadd.s32 %s60, 1
    %s62 = scalar_select %p59, %s60, %s61
    %p65 = pneg %p59
    %p66 = scmp.eq.s32.totalorder %s22, 4
    %p67 = por %p65, %p66
    %p68 = scmp.ne.s32.totalorder %s60, %s63
    %p69 = scmp.eq.s32.totalorder %s22, 0
    %p70 = por %p68, %p69
    %p71 = scmp.ne.s32.totalorder %s60, %s63
    %p72 = scmp.eq.s32.totalorder %s27, 4
    %p73 = por %p71, %p72
    %p74 = scmp.ne.s32.totalorder %s63, %s64
    %p75 = scmp.eq.s32.totalorder %s27, 0
    %p76 = por %p74, %p75
    %p77 = scmp.ne.s32.totalorder %s63, %s64
    %p78 = scmp.eq.s32.totalorder %s28, 4
    %p79 = por %p77, %p78
    %p81 = scmp.ne.s32.totalorder %s64, %s80
    %p82 = scmp.eq.s32.totalorder %s28, 0
    %p83 = por %p81, %p82
    %p84 = scmp.le.s32.totalorder 1, %s22
    %p85 = scmp.lt.s32.totalorder %s22, 6
    %p86 = pnand %p84, %p85
    %p87 = pneg %p86
    // Predicated region
    $region9: #{_fused_weight_norms.1} parent=5 // pred_check
      _
    $region10: #{_fused_weight_norms.1} parent=5 // pred_check_branch
      %89 = sbr.rel (%p86) target = $region12
    $region11: #{_fused_weight_norms.1} parent=5 // pred_region
      %s90 = ssub.s32 %s22, 1
    $region12: #{_fused_weight_norms.1} parent=5 // pred_fallthru
      _
    %p91 = scmp.lt.s32.totalorder %s22, 5
    // Predicated region
    $region13: #{_fused_weight_norms.1} parent=5 // pred_check
      %p92 = pneg %p91
    $region14: #{_fused_weight_norms.1} parent=5 // pred_check_branch
      %94 = sbr.rel (%p92) target = $region16
    $region15: #{_fused_weight_norms.1} parent=5 // pred_region
      // Predicated region
      $region17: #{_fused_weight_norms.1} parent=15 // pred_check
        %p95 = pneg %p42
      $region18: #{_fused_weight_norms.1} parent=15 // pred_check_branch
        %97 = sbr.rel (%p95) target = $region20
      $region19: #{_fused_weight_norms.1} parent=15 // pred_region
        %s98 = smul.u32 64, %s22
        %p99 = scmp.lt.s32.totalorder %s98, 319
        %s100 = scalar_select %p99, %s98, 319
        %s101 = smul.addr %s100, 8
        %s102 = scalar_lea.vmem %s2, %s101
        %s103 = smul.u32 64, %s22
      $region20: #{_fused_weight_norms.1} parent=15 // pred_fallthru
        _
    $region16: #{_fused_weight_norms.1} parent=5 // pred_fallthru
      _
    %p104 = scmp.le.s32.totalorder 1, %s22
    %p105 = scmp.lt.s32.totalorder %s22, 6
    %p106 = pnand %p104, %p105
    %p107 = pneg %p106
    // Predicated region
    $region21: #{_fused_weight_norms.1} parent=5 // pred_check
      _
    $region22: #{_fused_weight_norms.1} parent=5 // pred_check_branch
      %109 = sbr.rel (%p106) target = $region24
    $region23: #{_fused_weight_norms.1} parent=5 // pred_region
      %s110 = ssub.s32 %s22, 1
      %s111 = smul.u32 64, %s27
      %p112 = scmp.lt.s32.totalorder %s111, 319
      %s113 = scalar_select %p112, %s111, 319
      %s114 = smul.addr %s113, 8
      %s115 = scalar_lea.vmem %s2, %s114
      %p116 = pneg %p48
      %p117 = pneg %p45
      %p118 = pneg %p76
      %p119 = pneg %p73
      %s120 = sld [smem:[#allocation3 + %s27]]
      %p121 = scmp.lt.s32.totalorder %s120, 3
      %s122 = scalar_select %p121, %s120, 3
      %s123 = smul.addr %s122, 8
      %s124 = scalar_lea.vmem %s3, %s123
      %s125 = smul.u32 64, %s27
      %p126 = scmp.lt.s32.totalorder %s125, 319
      %s127 = scalar_select %p126, %s125, 319
      %s128 = smul.addr %s127, 8
      %s129 = scalar_lea.vmem %s2, %s128
      %s130 = smul.u32 64, %s27
      %s131 = sld [smem:[#allocation3 + %s27]]
      %p132 = scmp.lt.s32.totalorder %s131, 3
      %s133 = scalar_select %p132, %s131, 3
      %s134 = smul.addr %s133, 8
      %s135 = scalar_lea.vmem %s3, %s134
      %s136 = sld [smem:[#allocation3 + %s27]]
      %s137 = sld [smem:[#allocation4 + %s27]]
      %p138 = scmp.eq.s32.totalorder %s137, 1
      // Predicated region
      $region25: #{_fused_weight_norms.1} parent=23 // pred_check
        %p139 = pneg %p138
      $region26: #{_fused_weight_norms.1} parent=23 // pred_check_branch
        %141 = sbr.rel (%p139) target = $region28
      $region27: #{_fused_weight_norms.1} parent=23 // pred_region
        %142 = vst [vmem:[%s135] sm:$0xff] 0.0
      $region28: #{_fused_weight_norms.1} parent=23 // pred_fallthru
        _
      %v143 = vld [vmem:[%s129] sm:$0xff]
      %v144 = vld [vmem:[%s129 + $0x8] sm:$0xff]
      %v145 = vld [vmem:[%s129 + $0x10] sm:$0xff]
      %v146 = vld [vmem:[%s129 + $0x18] sm:$0xff]
      %v147 = vld [vmem:[%s129 + $0x20] sm:$0xff]
      %v148 = vld [vmem:[%s129 + $0x28] sm:$0xff]
      %v149 = vld [vmem:[%s129 + $0x30] sm:$0xff]
      %v150 = vld [vmem:[%s129 + $0x38] sm:$0xff]
      %v151 = vld [vmem:[%s129 + $0x40] sm:$0xff]
      %v152 = vld [vmem:[%s129 + $0x48] sm:$0xff]
      %v153 = vld [vmem:[%s129 + $0x50] sm:$0xff]
      %v154 = vld [vmem:[%s129 + $0x58] sm:$0xff]
      %v155 = vld [vmem:[%s129 + $0x60] sm:$0xff]
      %v156 = vld [vmem:[%s129 + $0x68] sm:$0xff]
      %v157 = vld [vmem:[%s129 + $0x70] sm:$0xff]
      %v158 = vld [vmem:[%s129 + $0x78] sm:$0xff]
      %v159 = vld [vmem:[%s129 + $0x80] sm:$0xff]
      %v160 = vld [vmem:[%s129 + $0x88] sm:$0xff]
      %v161 = vld [vmem:[%s129 + $0x90] sm:$0xff]
      %v162 = vld [vmem:[%s129 + $0x98] sm:$0xff]
      %v163 = vld [vmem:[%s129 + $0xa0] sm:$0xff]
      %v164 = vld [vmem:[%s129 + $0xa8] sm:$0xff]
      %v165 = vld [vmem:[%s129 + $0xb0] sm:$0xff]
      %v166 = vld [vmem:[%s129 + $0xb8] sm:$0xff]
      %v167 = vld [vmem:[%s129 + $0xc0] sm:$0xff]
      %v168 = vld [vmem:[%s129 + $0xc8] sm:$0xff]
      %v169 = vld [vmem:[%s129 + $0xd0] sm:$0xff]
      %v170 = vld [vmem:[%s129 + $0xd8] sm:$0xff]
      %v171 = vld [vmem:[%s129 + $0xe0] sm:$0xff]
      %v172 = vld [vmem:[%s129 + $0xe8] sm:$0xff]
      %v173 = vld [vmem:[%s129 + $0xf0] sm:$0xff]
      %v174 = vld [vmem:[%s129 + $0xf8] sm:$0xff]
      %v175 = vld [vmem:[%s129 + $0x100] sm:$0xff]
      %v176 = vld [vmem:[%s129 + $0x108] sm:$0xff]
      %v177 = vld [vmem:[%s129 + $0x110] sm:$0xff]
      %v178 = vld [vmem:[%s129 + $0x118] sm:$0xff]
      %v179 = vld [vmem:[%s129 + $0x120] sm:$0xff]
      %v180 = vld [vmem:[%s129 + $0x128] sm:$0xff]
      %v181 = vld [vmem:[%s129 + $0x130] sm:$0xff]
      %v182 = vld [vmem:[%s129 + $0x138] sm:$0xff]
      %v183 = vld [vmem:[%s129 + $0x140] sm:$0xff]
      %v184 = vld [vmem:[%s129 + $0x148] sm:$0xff]
      %v185 = vld [vmem:[%s129 + $0x150] sm:$0xff]
      %v186 = vld [vmem:[%s129 + $0x158] sm:$0xff]
      %v187 = vld [vmem:[%s129 + $0x160] sm:$0xff]
      %v188 = vld [vmem:[%s129 + $0x168] sm:$0xff]
      %v189 = vld [vmem:[%s129 + $0x170] sm:$0xff]
      %v190 = vld [vmem:[%s129 + $0x178] sm:$0xff]
      %v191 = vld [vmem:[%s129 + $0x180] sm:$0xff]
      %v192 = vld [vmem:[%s129 + $0x188] sm:$0xff]
      %v193 = vld [vmem:[%s129 + $0x190] sm:$0xff]
      %v194 = vld [vmem:[%s129 + $0x198] sm:$0xff]
      %v195 = vld [vmem:[%s129 + $0x1a0] sm:$0xff]
      %v196 = vld [vmem:[%s129 + $0x1a8] sm:$0xff]
      %v197 = vld [vmem:[%s129 + $0x1b0] sm:$0xff]
      %v198 = vld [vmem:[%s129 + $0x1b8] sm:$0xff]
      %v199 = vld [vmem:[%s129 + $0x1c0] sm:$0xff]
      %v200 = vld [vmem:[%s129 + $0x1c8] sm:$0xff]
      %v201 = vld [vmem:[%s129 + $0x1d0] sm:$0xff]
      %v202 = vld [vmem:[%s129 + $0x1d8] sm:$0xff]
      %v203 = vld [vmem:[%s129 + $0x1e0] sm:$0xff]
      %v204 = vld [vmem:[%s129 + $0x1e8] sm:$0xff]
      %v205 = vld [vmem:[%s129 + $0x1f0] sm:$0xff]
      %v206 = vld [vmem:[%s129 + $0x1f8] sm:$0xff]
      %v207 = vmul.f32 %v143, %v143
      %v208 = vmul.f32 %v144, %v144
      %v209 = vmul.f32 %v145, %v145
      %v210 = vmul.f32 %v146, %v146
      %v211 = vmul.f32 %v147, %v147
      %v212 = vmul.f32 %v148, %v148
      %v213 = vmul.f32 %v149, %v149
      %v214 = vmul.f32 %v150, %v150
      %v215 = vmul.f32 %v151, %v151
      %v216 = vmul.f32 %v152, %v152
      %v217 = vmul.f32 %v153, %v153
      %v218 = vmul.f32 %v154, %v154
      %v219 = vmul.f32 %v155, %v155
      %v220 = vmul.f32 %v156, %v156
      %v221 = vmul.f32 %v157, %v157
      %v222 = vmul.f32 %v158, %v158
      %v223 = vmul.f32 %v159, %v159
      %v224 = vmul.f32 %v160, %v160
      %v225 = vmul.f32 %v161, %v161
      %v226 = vmul.f32 %v162, %v162
      %v227 = vmul.f32 %v163, %v163
      %v228 = vmul.f32 %v164, %v164
      %v229 = vmul.f32 %v165, %v165
      %v230 = vmul.f32 %v166, %v166
      %v231 = vmul.f32 %v167, %v167
      %v232 = vmul.f32 %v168, %v168
      %v233 = vmul.f32 %v169, %v169
      %v234 = vmul.f32 %v170, %v170
      %v235 = vmul.f32 %v171, %v171
      %v236 = vmul.f32 %v172, %v172
      %v237 = vmul.f32 %v173, %v173
      %v238 = vmul.f32 %v174, %v174
      %v239 = vmul.f32 %v175, %v175
      %v240 = vmul.f32 %v176, %v176
      %v241 = vmul.f32 %v177, %v177
      %v242 = vmul.f32 %v178, %v178
      %v243 = vmul.f32 %v179, %v179
      %v244 = vmul.f32 %v180, %v180
      %v245 = vmul.f32 %v181, %v181
      %v246 = vmul.f32 %v182, %v182
      %v247 = vmul.f32 %v183, %v183
      %v248 = vmul.f32 %v184, %v184
      %v249 = vmul.f32 %v185, %v185
      %v250 = vmul.f32 %v186, %v186
      %v251 = vmul.f32 %v187, %v187
      %v252 = vmul.f32 %v188, %v188
      %v253 = vmul.f32 %v189, %v189
      %v254 = vmul.f32 %v190, %v190
      %v255 = vmul.f32 %v191, %v191
      %v256 = vmul.f32 %v192, %v192
      %v257 = vmul.f32 %v193, %v193
      %v258 = vmul.f32 %v194, %v194
      %v259 = vmul.f32 %v195, %v195
      %v260 = vmul.f32 %v196, %v196
      %v261 = vmul.f32 %v197, %v197
      %v262 = vmul.f32 %v198, %v198
      %v263 = vmul.f32 %v199, %v199
      %v264 = vmul.f32 %v200, %v200
      %v265 = vmul.f32 %v201, %v201
      %v266 = vmul.f32 %v202, %v202
      %v267 = vmul.f32 %v203, %v203
      %v268 = vmul.f32 %v204, %v204
      %v269 = vmul.f32 %v205, %v205
      %v270 = vmul.f32 %v206, %v206
      %v271 = vld [vmem:[%s135] sm:$0xff]
      %v272 = vadd.f32 %v207, %v208
      %v273 = vadd.f32 %v272, %v209
      %v274 = vadd.f32 %v273, %v210
      %v275 = vadd.f32 %v274, %v211
      %v276 = vadd.f32 %v275, %v212
      %v277 = vadd.f32 %v276, %v213
      %v278 = vadd.f32 %v277, %v214
      %v279 = vadd.f32 %v278, %v215
      %v280 = vadd.f32 %v279, %v216
      %v281 = vadd.f32 %v280, %v217
      %v282 = vadd.f32 %v281, %v218
      %v283 = vadd.f32 %v282, %v219
      %v284 = vadd.f32 %v283, %v220
      %v285 = vadd.f32 %v284, %v221
      %v286 = vadd.f32 %v285, %v222
      %v287 = vadd.f32 %v286, %v223
      %v288 = vadd.f32 %v287, %v224
      %v289 = vadd.f32 %v288, %v225
      %v290 = vadd.f32 %v289, %v226
      %v291 = vadd.f32 %v290, %v227
      %v292 = vadd.f32 %v291, %v228
      %v293 = vadd.f32 %v292, %v229
      %v294 = vadd.f32 %v293, %v230
      %v295 = vadd.f32 %v294, %v231
      %v296 = vadd.f32 %v295, %v232
      %v297 = vadd.f32 %v296, %v233
      %v298 = vadd.f32 %v297, %v234
      %v299 = vadd.f32 %v298, %v235
      %v300 = vadd.f32 %v299, %v236
      %v301 = vadd.f32 %v300, %v237
      %v302 = vadd.f32 %v301, %v238
      %v303 = vadd.f32 %v302, %v239
      %v304 = vadd.f32 %v303, %v240
      %v305 = vadd.f32 %v304, %v241
      %v306 = vadd.f32 %v305, %v242
      %v307 = vadd.f32 %v306, %v243
      %v308 = vadd.f32 %v307, %v244
      %v309 = vadd.f32 %v308, %v245
      %v310 = vadd.f32 %v309, %v246
      %v311 = vadd.f32 %v310, %v247
      %v312 = vadd.f32 %v311, %v248
      %v313 = vadd.f32 %v312, %v249
      %v314 = vadd.f32 %v313, %v250
      %v315 = vadd.f32 %v314, %v251
      %v316 = vadd.f32 %v315, %v252
      %v317 = vadd.f32 %v316, %v253
      %v318 = vadd.f32 %v317, %v254
      %v319 = vadd.f32 %v318, %v255
      %v320 = vadd.f32 %v319, %v256
      %v321 = vadd.f32 %v320, %v257
      %v322 = vadd.f32 %v321, %v258
      %v323 = vadd.f32 %v322, %v259
      %v324 = vadd.f32 %v323, %v260
      %v325 = vadd.f32 %v324, %v261
      %v326 = vadd.f32 %v325, %v262
      %v327 = vadd.f32 %v326, %v263
      %v328 = vadd.f32 %v327, %v264
      %v329 = vadd.f32 %v328, %v265
      %v330 = vadd.f32 %v329, %v266
      %v331 = vadd.f32 %v330, %v267
      %v332 = vadd.f32 %v331, %v268
      %v333 = vadd.f32 %v332, %v269
      %v334 = vadd.f32 %v333, %v270
      %v335 = vadd.f32 %v271, %v334
      %336 = vst [vmem:[%s135] sm:$0xff] %v335
      %s337 = sld [smem:[#allocation3 + %s27]]
      %p338 = scmp.lt.s32.totalorder %s337, 3
      %s339 = scalar_select %p338, %s337, 3
      %s340 = smul.addr %s339, 8
      %s341 = scalar_lea.vmem %s3, %s340
      // Predicated region
      $region29: #{_fused_weight_norms.1} parent=23 // pred_check
        %p342 = pneg %p73
      $region30: #{_fused_weight_norms.1} parent=23 // pred_check_branch
        %344 = sbr.rel (%p342) target = $region32
      $region31: #{_fused_weight_norms.1} parent=23 // pred_region
        %s345 = sld [smem:[#allocation3 + %s27]]
      $region32: #{_fused_weight_norms.1} parent=23 // pred_fallthru
        _
    $region24: #{_fused_weight_norms.1} parent=5 // pred_fallthru
      _
    %p346 = scmp.le.s32.totalorder 2, %s22
    // Predicated region
    $region33: #{_fused_weight_norms.1} parent=5 // pred_check
      %p347 = pneg %p346
    $region34: #{_fused_weight_norms.1} parent=5 // pred_check_branch
      %349 = sbr.rel (%p347) target = $region36
    $region35: #{_fused_weight_norms.1} parent=5 // pred_region
      %s350 = ssub.s32 %s22, 2
      // Predicated region
      $region37: #{_fused_weight_norms.1} parent=35 // pred_check
        %p351 = pneg %p79
      $region38: #{_fused_weight_norms.1} parent=35 // pred_check_branch
        %353 = sbr.rel (%p351) target = $region40
      $region39: #{_fused_weight_norms.1} parent=35 // pred_region
        %s354 = sld [smem:[#allocation3 + %s28]]
        %p355 = scmp.lt.s32.totalorder %s354, 3
        %s356 = scalar_select %p355, %s354, 3
        %s357 = smul.addr %s356, 8
        %s358 = scalar_lea.vmem %s3, %s357
      $region40: #{_fused_weight_norms.1} parent=35 // pred_fallthru
        _
    $region36: #{_fused_weight_norms.1} parent=5 // pred_fallthru
      _
  $region6: #{_fused_weight_norms.1} parent=0 // loop_footer
    %s26 = sadd.s32 1, %s22
  $region7: #{_fused_weight_norms.1} parent=0 // loop_footer_branch
    %21 = sbr.rel target = $region3
  $region8: #{_fused_weight_norms.1} parent=0 // loop_exit
    _

</llo_original>
